<compile_context>
chip_gen: v7x
topology: tpu7x:2x2x1
jax: 0.10.0
libtpu: 0.0.40
codegen_flags: <defaults>
</compile_context>

<pallas_src>
import functools

import jax
import jax.numpy as jnp
from jax.experimental import pallas as pl
from jax.experimental.pallas import tpu as pltpu


_DEFAULT_BLOCK_BYTES = 2 * 1024 * 1024  # ~2 MiB per (tn, D) f32 block


def _round_up(n, m):
    return ((n + m - 1) // m) * m


def _row_tiling(n, d, block_bytes):
    """Rows per tile: multiple of 8, sized so a (tn, d) f32 block ~= block_bytes."""
    tn = (block_bytes // (4 * d)) // 8 * 8
    tn = max(8, min(tn, 4096))
    n8 = _round_up(max(n, 1), 8)
    return min(tn, n8)


def _stats_grid(tiles):
    """(num_cores, tiles_per_core) for the 2-way parallel reduction split."""
    nc = 2 if tiles >= 2 else 1
    return nc, pl.cdiv(tiles, nc)


# --------------------------------------------------------------------------
# layernorm (nn.LayerNorm(hidden_dim), eps=1e-5) — row-tiled, parallel grid.
# Ragged last tile: garbage rows compute garbage, writes past N are clipped.
# --------------------------------------------------------------------------
def _layernorm_kernel(x_ref, w_ref, b_ref, o_ref):
    x = x_ref[...].astype(jnp.float32)                        # (TN, D)
    mean = jnp.mean(x, axis=-1, keepdims=True)
    xc = x - mean
    var = jnp.mean(xc * xc, axis=-1, keepdims=True)
    o_ref[...] = (xc * jax.lax.rsqrt(var + 1e-5) * w_ref[...]
                  + b_ref[...]).astype(o_ref.dtype)


def layernorm(x, weight, bias, *, block_bytes=_DEFAULT_BLOCK_BYTES):
    N, D = x.shape
    tn = _row_tiling(N, D, block_bytes)
    tiles = pl.cdiv(N, tn)
    row_spec = pl.BlockSpec((tn, D), lambda i: (i, 0))
    vec_spec = pl.BlockSpec((1, D), lambda i: (0, 0))
    return pl.pallas_call(
        _layernorm_kernel,
        out_shape=jax.ShapeDtypeStruct((N, D), x.dtype),
        grid_spec=pltpu.PrefetchScalarGridSpec(
            num_scalar_prefetch=0,
            grid=(tiles,),
            in_specs=[row_spec, vec_spec, vec_spec],
            out_specs=row_spec,
        ),
        compiler_params=pltpu.CompilerParams(
            dimension_semantics=("parallel",)),
    )(x, weight.reshape(1, D), bias.reshape(1, D))


# --------------------------------------------------------------------------
# batchnorm (nn.BatchNorm1d(hidden_dim), training-mode stats, eps=1e-5)
# Pass 1: per-core streaming sum / sum-of-squares (masked tail rows).
# Pass 2: per-tile fused affine with precomputed scale/shift.
# --------------------------------------------------------------------------
def _bn_stats_kernel(n_ref, x_ref, sum_ref, sq_ref, *, tn, tiles_per_core):
    c = pl.program_id(0)
    t = pl.program_id(1)

    @pl.when(t == 0)
    def _():
        sum_ref[...] = jnp.zeros_like(sum_ref)
        sq_ref[...] = jnp.zeros_like(sq_ref)

    row0 = (c * tiles_per_core + t) * tn
    rows = row0 + jax.lax.broadcasted_iota(jnp.int32, (tn, 1), 0)
    valid = rows < n_ref[0]                                    # (TN, 1)
    x = jnp.where(valid, x_ref[...].astype(jnp.float32), 0.0)  # (TN, D)
    sum_ref[...] += jnp.sum(x, axis=0, keepdims=True)
    sq_ref[...] += jnp.sum(x * x, axis=0, keepdims=True)


def _affine_apply_kernel(x_ref, scale_ref, shift_ref, o_ref):
    x = x_ref[...].astype(jnp.float32)                         # (TN, D)
    o_ref[...] = (x * scale_ref[...] + shift_ref[...]).astype(o_ref.dtype)


def batchnorm(x, weight, bias, *, block_bytes=_DEFAULT_BLOCK_BYTES):
    N, D = x.shape
    tn = _row_tiling(N, D, block_bytes)
    tiles = pl.cdiv(N, tn)
    nc, tpc = _stats_grid(tiles)
    n_smem = jnp.array([N], jnp.int32)

    x_stats_spec = pl.BlockSpec(
        (tn, D), lambda c, t, n: (jnp.minimum(c * tpc + t, tiles - 1), 0))
    acc_spec = pl.BlockSpec((None, 1, D), lambda c, t, n: (c, 0, 0))

    psum, psq = pl.pallas_call(
        functools.partial(_bn_stats_kernel, tn=tn, tiles_per_core=tpc),
        out_shape=(jax.ShapeDtypeStruct((nc, 1, D), jnp.float32),
                   jax.ShapeDtypeStruct((nc, 1, D), jnp.float32)),
        grid_spec=pltpu.PrefetchScalarGridSpec(
            num_scalar_prefetch=1,
            grid=(nc, tpc),
            in_specs=[x_stats_spec],
            out_specs=[acc_spec, acc_spec],
        ),
        compiler_params=pltpu.CompilerParams(
            dimension_semantics=("parallel", "arbitrary")),
    )(n_smem, x)

    # Tiny (1, D) math, hoisted out of the per-tile apply kernel.
    sums = jnp.sum(psum, axis=0)                               # (1, D)
    sqs = jnp.sum(psq, axis=0)                                 # (1, D)
    mean = sums / N
    var = jnp.maximum(sqs / N - mean * mean, 0.0)              # biased variance
    scale = weight.reshape(1, D) * jax.lax.rsqrt(var + 1e-5)
    shift = bias.reshape(1, D) - mean * scale

    row_spec = pl.BlockSpec((tn, D), lambda i: (i, 0))
    vec_spec = pl.BlockSpec((1, D), lambda i: (0, 0))
    return pl.pallas_call(
        _affine_apply_kernel,
        out_shape=jax.ShapeDtypeStruct((N, D), x.dtype),
        grid_spec=pltpu.PrefetchScalarGridSpec(
            num_scalar_prefetch=0,
            grid=(tiles,),
            in_specs=[row_spec, vec_spec, vec_spec],
            out_specs=row_spec,
        ),
        compiler_params=pltpu.CompilerParams(
            dimension_semantics=("parallel",)),
    )(x, scale, shift)


# --------------------------------------------------------------------------
# graphnorm — per-graph segment normalization, tiled two-pass.
# Pass 1: per-core partial (B, 2D) accumulators of [sum(x), sum(x^2)] via one
#         fused one-hot matmul per tile (tail rows masked against N).
# Pass 2: per-tile broadcast of precomputed [mean*mean_scale, inv_std] via one
#         (TN, B) x (B, 2D) matmul, then fused affine.
# --------------------------------------------------------------------------
def _gn_stats_kernel(n_ref, seg_ref, x_ref, acc_ref, *,
                     tn, tiles_per_core, num_graphs):
    c = pl.program_id(0)
    t = pl.program_id(1)

    @pl.when(t == 0)
    def _():
        acc_ref[...] = jnp.zeros_like(acc_ref)

    row0 = (c * tiles_per_core + t) * tn
    rows = row0 + jax.lax.broadcasted_iota(jnp.int32, (tn, 1), 0)
    valid = rows < n_ref[0]                                    # (TN, 1)
    x = jnp.where(valid, x_ref[...].astype(jnp.float32), 0.0)  # (TN, D)
    xx = jnp.concatenate([x, x * x], axis=-1)                  # (TN, 2D)

    gid = jax.lax.broadcasted_iota(jnp.int32, (tn, num_graphs), 1)
    onehot = (gid == seg_ref[...]).astype(jnp.float32)         # (TN, B)
    # onehot^T @ [x | x^2]  -> (B, 2D); masked rows contribute zero.
    acc_ref[...] += jax.lax.dot_general(
        onehot, xx, (((0,), (0,)), ((), ())),
        preferred_element_type=jnp.float32)


def _gn_apply_kernel(seg_ref, x_ref, stats_ref, w_ref, b_ref, o_ref, *,
                     num_graphs, d):
    tn = x_ref.shape[0]
    gid = jax.lax.broadcasted_iota(jnp.int32, (tn, num_graphs), 1)
    onehot = (gid == seg_ref[...]).astype(jnp.float32)         # (TN, B)
    # broadcast per-graph [mean*ms | inv_std] to nodes: (TN, B) @ (B, 2D)
    per_node = jnp.dot(onehot, stats_ref[...],
                       preferred_element_type=jnp.float32)     # (TN, 2D)
    mms_n = per_node[:, :d]
    istd_n = per_node[:, d:]
    x = x_ref[...].astype(jnp.float32)
    o_ref[...] = (w_ref[...] * (x - mms_n) * istd_n
                  + b_ref[...]).astype(o_ref.dtype)


def graphnorm(x, batch_num_nodes, weight, bias, mean_scale, *,
              block_bytes=_DEFAULT_BLOCK_BYTES):
    N, D = x.shape
    B = batch_num_nodes.shape[0]
    tn = _row_tiling(N, D, block_bytes)
    tiles = pl.cdiv(N, tn)
    nc, tpc = _stats_grid(tiles)

    seg = jnp.repeat(jnp.arange(B, dtype=jnp.int32), batch_num_nodes,
                     total_repeat_length=N).reshape(N, 1)
    n_smem = jnp.array([N], jnp.int32)

    clamp = lambda c, t: jnp.minimum(c * tpc + t, tiles - 1)
    seg_stats_spec = pl.BlockSpec((tn, 1), lambda c, t, n: (clamp(c, t), 0))
    x_stats_spec = pl.BlockSpec((tn, D), lambda c, t, n: (clamp(c, t), 0))
    acc_spec = pl.BlockSpec((None, B, 2 * D), lambda c, t, n: (c, 0, 0))

    pacc = pl.pallas_call(
        functools.partial(_gn_stats_kernel, tn=tn, tiles_per_core=tpc,
                          num_graphs=B),
        out_shape=jax.ShapeDtypeStruct((nc, B, 2 * D), jnp.float32),
        grid_spec=pltpu.PrefetchScalarGridSpec(
            num_scalar_prefetch=1,
            grid=(nc, tpc),
            in_specs=[seg_stats_spec, x_stats_spec],
            out_specs=acc_spec,
        ),
        compiler_params=pltpu.CompilerParams(
            dimension_semantics=("parallel", "arbitrary")),
    )(n_smem, seg, x)

    # Tiny (B, D) math between passes, hoisted out of the apply kernel.
    acc = jnp.sum(pacc, axis=0)                                # (B, 2D)
    sums, sqs = acc[:, :D], acc[:, D:]
    cnt = jnp.maximum(batch_num_nodes.astype(jnp.float32), 1.0)[:, None]
    mean = sums / cnt                                          # (B, D)  E[x]
    mms = mean * mean_scale.reshape(1, D)                      # mean * mean_scale
    # E[(x - mean*ms)^2] = E[x^2] - 2*ms*mean*E[x] + (mean*ms)^2
    var = sqs / cnt - 2.0 * mms * mean + mms * mms
    inv_std = jax.lax.rsqrt(jnp.maximum(var, 0.0) + 1e-6)
    stats_cat = jnp.concatenate([mms, inv_std], axis=-1)       # (B, 2D)

    seg_spec = pl.BlockSpec((tn, 1), lambda i: (i, 0))
    row_spec = pl.BlockSpec((tn, D), lambda i: (i, 0))
    stat_spec = pl.BlockSpec((B, 2 * D), lambda i: (0, 0))
    vec_spec = pl.BlockSpec((1, D), lambda i: (0, 0))
    return pl.pallas_call(
        functools.partial(_gn_apply_kernel, num_graphs=B, d=D),
        out_shape=jax.ShapeDtypeStruct((N, D), x.dtype),
        grid_spec=pltpu.PrefetchScalarGridSpec(
            num_scalar_prefetch=0,
            grid=(tiles,),
            in_specs=[seg_spec, row_spec, stat_spec, vec_spec, vec_spec],
            out_specs=row_spec,
        ),
        compiler_params=pltpu.CompilerParams(
            dimension_semantics=("parallel",)),
    )(seg, x, stats_cat, weight.reshape(1, D), bias.reshape(1, D))


# --------------------------------------------------------------------------
# NormLayer wrapper mirroring the PyTorch module
# --------------------------------------------------------------------------
class Graph:
    def __init__(self, batch_num_nodes):
        self.batch_num_nodes = batch_num_nodes


class NormLayer:
    def __init__(self, hidden_dim, norm_type, *, block_bytes=_DEFAULT_BLOCK_BYTES):
        self.hidden_dim = hidden_dim
        self.norm_type = norm_type
        self.block_bytes = block_bytes
        if norm_type not in ("batchnorm", "layernorm", "graphnorm"):
            raise NotImplementedError
        # deterministic default-init parameters (nn.Parameter / BN / LN defaults)
        self.weight = jnp.ones((hidden_dim,), jnp.float32)
        self.bias = jnp.zeros((hidden_dim,), jnp.float32)
        if norm_type == "graphnorm":
            self.mean_scale = jnp.ones((hidden_dim,), jnp.float32)

    def __call__(self, graph, x):
        if self.norm_type == "batchnorm":
            return batchnorm(x, self.weight, self.bias,
                             block_bytes=self.block_bytes)
        if self.norm_type == "layernorm":
            return layernorm(x, self.weight, self.bias,
                             block_bytes=self.block_bytes)
        batch_list = jnp.asarray(graph.batch_num_nodes, dtype=jnp.int32)
        return graphnorm(x, batch_list, self.weight, self.bias,
                         self.mean_scale, block_bytes=self.block_bytes)


# --------------------------------------------------------------------------
# pure-JAX references for verification
# --------------------------------------------------------------------------
def graphnorm_ref(x, batch_num_nodes, weight, bias, mean_scale):
    N, D = x.shape
    B = batch_num_nodes.shape[0]
    seg = jnp.repeat(jnp.arange(B), batch_num_nodes, total_repeat_length=N)
    cnt = batch_num_nodes.astype(jnp.float32)[:, None]
    sums = jax.ops.segment_sum(x, seg, num_segments=B)
    mean = sums / cnt
    sub = x - mean[seg] * mean_scale
    var = jax.ops.segment_sum(sub * sub, seg, num_segments=B) / cnt
    std = jnp.sqrt(var + 1e-6)
    return weight * sub / std[seg] + bias


def _check_all(x, batch_num_nodes, block_bytes=_DEFAULT_BLOCK_BYTES,
               atol=1e-4, rtol=1e-4):
    hidden = x.shape[1]
    graph = Graph(batch_num_nodes)
    kw, kb, km = jax.random.split(jax.random.PRNGKey(42), 3)
    w = 1.0 + 0.1 * jax.random.normal(kw, (hidden,), jnp.float32)
    b = 0.1 * jax.random.normal(kb, (hidden,), jnp.float32)
    ms = 1.0 + 0.1 * jax.random.normal(km, (hidden,), jnp.float32)

    gn = NormLayer(hidden, "graphnorm", block_bytes=block_bytes)
    gn.weight, gn.bias, gn.mean_scale = w, b, ms
    out_gn = jax.block_until_ready(gn(graph, x))
    ref_gn = graphnorm_ref(x, batch_num_nodes, w, b, ms)
    assert jnp.allclose(out_gn, ref_gn, atol=atol, rtol=rtol), "graphnorm mismatch"

    ln = NormLayer(hidden, "layernorm", block_bytes=block_bytes)
    ln.weight, ln.bias = w, b
    out_ln = jax.block_until_ready(ln(graph, x))
    ref_ln = (x - x.mean(-1, keepdims=True)) * jax.lax.rsqrt(
        x.var(-1, keepdims=True) + 1e-5) * w + b
    assert jnp.allclose(out_ln, ref_ln, atol=atol, rtol=rtol), "layernorm mismatch"

    bn = NormLayer(hidden, "batchnorm", block_bytes=block_bytes)
    bn.weight, bn.bias = w, b
    out_bn = jax.block_until_ready(bn(graph, x))
    ref_bn = (x - x.mean(0, keepdims=True)) * jax.lax.rsqrt(
        x.var(0, keepdims=True) + 1e-5) * w + b
    assert jnp.allclose(out_bn, ref_bn, atol=atol, rtol=rtol), "batchnorm mismatch"


if __name__ == "__main__":
    k1, k2 = jax.random.split(jax.random.PRNGKey(0))

    # Case 1: tiny shapes (single tile, D < 128), (num_nodes, hidden_dim) layout.
    hidden = 32
    batch_num_nodes1 = jnp.array([3, 5], dtype=jnp.int32)   # 2 graphs, 8 nodes
    N1 = int(batch_num_nodes1.sum())
    x1 = jax.random.normal(k1, (N1, hidden), dtype=jnp.float32)
    _check_all(x1, batch_num_nodes1)

    # Case 2: multi-tile, ragged last tile, 2-way parallel stats split.
    # Small block budget forces tn=256 -> 5 tiles over 1037 rows.
    batch_num_nodes2 = jnp.array([300, 137, 500, 100], dtype=jnp.int32)
    N2 = int(batch_num_nodes2.sum())                        # 1037 nodes
    x2 = jax.random.normal(k2, (N2, 128), dtype=jnp.float32)
    _check_all(x2, batch_num_nodes2, block_bytes=128 * 1024)

    print("KERNEL_OK")
</pallas_src>

<mosaic_0001>
module attributes {stable_mosaic.version = 11 : i64} {
  func.func @_gn_stats_kernel(%arg0: i32, %arg1: i32, %arg2: memref<1xi32, #tpu.memory_space<smem>>, %arg3: memref<8x1xi32, #tpu.memory_space<vmem>>, %arg4: memref<8x32xf32, #tpu.memory_space<vmem>>, %arg5: memref<1x2x64xf32, #tpu.memory_space<vmem>>) attributes {dimension_semantics = [#tpu.dimension_semantics<parallel>, #tpu.dimension_semantics<arbitrary>], iteration_bounds = array<i64: 1, 1>, scalar_prefetch = 1 : i64, scratch_operands = 0 : i64, tpu.core_type = #tpu.core_type<tc>, window_params = [{transform_indices = @transform_0, window_bounds = array<i64: 8, 1>}, {transform_indices = @transform_1, window_bounds = array<i64: 8, 32>}, {transform_indices = @transform_2, window_bounds = array<i64: 1, 2, 64>}]} {
    %c0_i32 = arith.constant 0 : i32
    %0 = arith.cmpi eq, %arg1, %c0_i32 : i32
    %1 = arith.extui %0 : i1 to i32
    %c0_i32_0 = arith.constant 0 : i32
    %2 = arith.cmpi ne, %1, %c0_i32_0 : i32
    scf.if %2 {
      %cst_12 = arith.constant 0.000000e+00 : f32
      %32 = vector.broadcast %cst_12 : f32 to vector<2x64xf32>
      %c0_13 = arith.constant 0 : index
      %c0_14 = arith.constant 0 : index
      %c0_15 = arith.constant 0 : index
      %33 = vector.load %arg5[%c0_13, %c0_14, %c0_15] : memref<1x2x64xf32, #tpu.memory_space<vmem>>, vector<1x2x64xf32>
      %34 = vector.shape_cast %33 : vector<1x2x64xf32> to vector<2x64xf32>
      %35 = vector.shape_cast %32 : vector<2x64xf32> to vector<1x2x64xf32>
      tpu.vector_store %arg5[%c0_13, %c0_14, %c0_15], %35 {strides = array<i32>} : memref<1x2x64xf32, #tpu.memory_space<vmem>>, vector<1x2x64xf32>,
    } else {
    }
    %c1_i32 = arith.constant 1 : i32
    %3 = arith.muli %arg0, %c1_i32 : i32
    %4 = arith.addi %3, %arg1 : i32
    %c8_i32 = arith.constant 8 : i32
    %5 = arith.muli %4, %c8_i32 : i32
    %6 = tpu.iota {dimensions = array<i32: 0>} : vector<8x1xi32>
    %7 = vector.broadcast %5 : i32 to vector<8x1xi32>
    %8 = arith.addi %7, %6 : vector<8x1xi32>
    %c0 = arith.constant 0 : index
    %9 = memref.load %arg2[%c0] : memref<1xi32, #tpu.memory_space<smem>>
    %10 = vector.broadcast %9 : i32 to vector<8x1xi32>
    %11 = arith.cmpi slt, %8, %10 : vector<8x1xi32>
    %c0_1 = arith.constant 0 : index
    %c0_2 = arith.constant 0 : index
    %12 = vector.load %arg4[%c0_1, %c0_2] : memref<8x32xf32, #tpu.memory_space<vmem>>, vector<8x32xf32>
    %cst = arith.constant 0.000000e+00 : f32
    %13 = vector.shape_cast %11 : vector<8x1xi1> to vector<8x1xi1>
    %14 = vector.broadcast %13 : vector<8x1xi1> to vector<8x32xi1>
    %15 = vector.broadcast %cst : f32 to vector<8x32xf32>
    %16 = arith.select %14, %12, %15 : vector<8x32xi1>, vector<8x32xf32>
    %17 = arith.mulf %16, %16 : vector<8x32xf32>
    %18 = tpu.concatenate %16, %17 in 1 : vector<8x32xf32>, vector<8x32xf32> -> vector<8x64xf32>
    %19 = tpu.iota {dimensions = array<i32: 1>} : vector<8x2xi32>
    %c0_3 = arith.constant 0 : index
    %c0_4 = arith.constant 0 : index
    %20 = vector.load %arg3[%c0_3, %c0_4] : memref<8x1xi32, #tpu.memory_space<vmem>>, vector<8x1xi32>
    %21 = vector.broadcast %20 : vector<8x1xi32> to vector<8x2xi32>
    %22 = arith.cmpi eq, %19, %21 : vector<8x2xi32>
    %23 = arith.extui %22 : vector<8x2xi1> to vector<8x2xi32>
    %24 = arith.sitofp %23 : vector<8x2xi32> to vector<8x2xf32>
    %c0_5 = arith.constant 0 : index
    %c0_6 = arith.constant 0 : index
    %c0_7 = arith.constant 0 : index
    %25 = vector.load %arg5[%c0_5, %c0_6, %c0_7] : memref<1x2x64xf32, #tpu.memory_space<vmem>>, vector<1x2x64xf32>
    %26 = vector.shape_cast %25 : vector<1x2x64xf32> to vector<2x64xf32>
    %cst_8 = arith.constant dense<0.000000e+00> : vector<2x64xf32>
    %27 = tpu.matmul %24, %18, %cst_8 {dimension_numbers = #tpu.dot_dimension_numbers<[0], [0], [1], [1], [0, 1, 1, 1], [], []>} : vector<8x2xf32>, vector<8x64xf32>, vector<2x64xf32> -> vector<2x64xf32>
    %28 = arith.addf %26, %27 : vector<2x64xf32>
    %c0_9 = arith.constant 0 : index
    %c0_10 = arith.constant 0 : index
    %c0_11 = arith.constant 0 : index
    %29 = vector.load %arg5[%c0_9, %c0_10, %c0_11] : memref<1x2x64xf32, #tpu.memory_space<vmem>>, vector<1x2x64xf32>
    %30 = vector.shape_cast %29 : vector<1x2x64xf32> to vector<2x64xf32>
    %31 = vector.shape_cast %28 : vector<2x64xf32> to vector<1x2x64xf32>
    tpu.vector_store %arg5[%c0_9, %c0_10, %c0_11], %31 {strides = array<i32>} : memref<1x2x64xf32, #tpu.memory_space<vmem>>, vector<1x2x64xf32>,
    return
  }
  func.func @transform_0(%arg0: i32, %arg1: i32, %arg2: memref<1xi32, #tpu.memory_space<smem>>) -> (i32, i32) {
    %c1_i32 = arith.constant 1 : i32
    %0 = arith.muli %arg0, %c1_i32 : i32
    %1 = arith.addi %0, %arg1 : i32
    %c0_i32 = arith.constant 0 : i32
    %2 = arith.minsi %1, %c0_i32 : i32
    %c0_i32_0 = arith.constant 0 : i32
    %c0_i32_1 = arith.constant 0 : i32
    return %2, %c0_i32_0 : i32, i32
  }
  func.func @transform_1(%arg0: i32, %arg1: i32, %arg2: memref<1xi32, #tpu.memory_space<smem>>) -> (i32, i32) {
    %c1_i32 = arith.constant 1 : i32
    %0 = arith.muli %arg0, %c1_i32 : i32
    %1 = arith.addi %0, %arg1 : i32
    %c0_i32 = arith.constant 0 : i32
    %2 = arith.minsi %1, %c0_i32 : i32
    %c0_i32_0 = arith.constant 0 : i32
    %c0_i32_1 = arith.constant 0 : i32
    return %2, %c0_i32_0 : i32, i32
  }
  func.func @transform_2(%arg0: i32, %arg1: i32, %arg2: memref<1xi32, #tpu.memory_space<smem>>) -> (i32, i32, i32) {
    %c0_i32 = arith.constant 0 : i32
    %c0_i32_0 = arith.constant 0 : i32
    %c0_i32_1 = arith.constant 0 : i32
    return %arg0, %c0_i32, %c0_i32_0 : i32, i32, i32
  }
}

</mosaic_0001>

<llo_original>
// kernel: tpu_custom_call.1
$region0: #{tpu_custom_call.1}
  #allocation0 [shape = 'u32[]', space=smem, size = 0x4, offset = 0x4, fixed_abs, tag = 'smem constant byte address 0x4 - core index']
  #allocation1 [shape = 'u32[144,128]{1,0:T(1,128)}', space=vmem, size = 0x12000, scoped, tag = 'internal scratch']
  #allocation2 [shape = 's32[1]{0}', space=sflag, size = 0x4, scoped, tag = 'scoped memory for tpu_custom_call.1']
  #allocation3 [shape = 's32[1]{0:T(128)S(6)}', space=smem, size = 0x200, scoped, tag = 'prefetched SMEM operand 0']
  %s0 = inlined_call_operand.<no memory space> [shape: s32[1], index: 0, kind: input, shape index: {}]
  %s1 = inlined_call_operand.vmem [shape: s32[8,1], index: 1, kind: input, shape index: {}]
  %s2 = inlined_call_operand.vmem [shape: f32[8,32], index: 2, kind: input, shape index: {}]
  %s3 = inlined_call_operand.hbm [shape: f32[1,2,64], index: 3, kind: output, shape index: {}]
  %s4 = sld [smem:[#allocation0]]
  $region22: #{tpu_custom_call.1} parent=0
    _
  %s6 = ssub.s32 1, %s4
  %s7 = scalar_select 0, %s6, %s4
  %8 = sst [smem:[#allocation3]] %s0
  $region1: #{tpu_custom_call.1} parent=0
    #allocation4 [shape = 'u8[1024]{0}', space=vmem, size = 0x400, scoped, tag = 'output window, operand 0, single buffered']
    #allocation5 [shape = 's32[1]{0}', space=sflag, size = 0x4, scoped, tag = 'scoped memory for tpu_custom_call.1']
    %9 = vsyncpa [#allocation5], 0
    // Predicated region
    $region2: #{tpu_custom_call.1} parent=1 // pred_check
      _
    $region3: #{tpu_custom_call.1} parent=1 // pred_check_branch
      %11 = sbr.rel (0) target = $region5
    $region4: #{tpu_custom_call.1} parent=1 // pred_region
      %s12 = sadd.s32 0, 0
      %p13 = scmp.lt.s32.totalorder %s12, 0
      %s14 = scalar_select %p13, %s12, 0
      %p15 = scmp.lt.s32.totalorder %s14, 0
      %s16 = scalar_select %p15, %s14, 0
      %s17 = smul.addr %s16, 8
      %s18 = scalar_lea.vmem %s1, %s17
      %s19 = sadd.s32 0, 0
      %p20 = scmp.lt.s32.totalorder %s19, 0
      %s21 = scalar_select %p20, %s19, 0
    $region5: #{tpu_custom_call.1} parent=1 // pred_fallthru
      _
    // Predicated region
    $region6: #{tpu_custom_call.1} parent=1 // pred_check
      _
    $region7: #{tpu_custom_call.1} parent=1 // pred_check_branch
      %23 = sbr.rel (0) target = $region9
    $region8: #{tpu_custom_call.1} parent=1 // pred_region
      %s24 = sadd.s32 0, 0
      %p25 = scmp.lt.s32.totalorder %s24, 0
      %s26 = scalar_select %p25, %s24, 0
      %p27 = scmp.lt.s32.totalorder %s26, 0
      %s28 = scalar_select %p27, %s26, 0
      %s29 = smul.addr %s28, 8
      %s30 = scalar_lea.vmem %s2, %s29
      %s31 = sadd.s32 0, 0
      %p32 = scmp.lt.s32.totalorder %s31, 0
      %s33 = scalar_select %p32, %s31, 0
    $region9: #{tpu_custom_call.1} parent=1 // pred_fallthru
      _
    %s34 = sadd.s32 0, 0
    %p35 = scmp.lt.s32.totalorder %s34, 0
    %s36 = scalar_select %p35, %s34, 0
    %p37 = scmp.lt.s32.totalorder %s36, 0
    %s38 = scalar_select %p37, %s36, 0
    %s39 = smul.addr %s38, 8
    %s40 = scalar_lea.vmem %s1, %s39
    %s41 = sadd.s32 0, 0
    %p42 = scmp.lt.s32.totalorder %s41, 0
    %s43 = scalar_select %p42, %s41, 0
    %p44 = scmp.lt.s32.totalorder %s43, 0
    %s45 = scalar_select %p44, %s43, 0
    %s46 = smul.addr %s45, 8
    %s47 = scalar_lea.vmem %s2, %s46
    %s48 = sadd.s32 0, 0
    %p49 = scmp.lt.s32.totalorder %s48, 0
    %s50 = scalar_select %p49, %s48, 0
    %p51 = scmp.lt.s32.totalorder %s50, 0
    %s52 = scalar_select %p51, %s50, 0
    %s53 = smul.addr %s52, 8
    %s54 = scalar_lea.vmem %s1, %s53
    %s55 = sadd.s32 0, 0
    %p56 = scmp.lt.s32.totalorder %s55, 0
    %s57 = scalar_select %p56, %s55, 0
    %s58 = sadd.s32 0, 0
    %p59 = scmp.lt.s32.totalorder %s58, 0
    %s60 = scalar_select %p59, %s58, 0
    %p61 = scmp.lt.s32.totalorder %s60, 0
    %s62 = scalar_select %p61, %s60, 0
    %s63 = smul.addr %s62, 8
    %s64 = scalar_lea.vmem %s2, %s63
    %s65 = sadd.s32 0, 0
    %p66 = scmp.lt.s32.totalorder %s65, 0
    %s67 = scalar_select %p66, %s65, 0
    %p68 = scmp.eq.s32.totalorder 0, 0
    // Predicated region
    $region10: #{tpu_custom_call.1} parent=1 // pred_check
      %p69 = pneg %p68
    $region11: #{tpu_custom_call.1} parent=1 // pred_check_branch
      %71 = sbr.rel (%p69) target = $region13
    $region12: #{tpu_custom_call.1} parent=1 // pred_region
      %vm72 = vcmask 517120
      %73 = vst.msk [vmem:[#allocation4] sm:$0x3] %vm72, 0.0
    $region13: #{tpu_custom_call.1} parent=1 // pred_fallthru
      _
    %s74 = sadd.s32 0, 0
    %s75 = smul.u32 %s74, 8
    %v76 = vlaneseq
    %v77 = vshrl.u32 %v76, 7
    %v78 = vstv %s75
    %v79 = vadd.s32 %v78, %v77
    %s80 = sld [smem:[#allocation3]]
    %v81 = vstv %s80
    %vm82 = vcmp.lt.s32.totalorder %v79, %v81
    %v83 = vld [vmem:[%s64] sm:$0xff]
    %v84 = vsel %vm82, 1, 0
    %vm85 = vcmp.eq.s32.totalorder %v84, 1
    %v86 = vsel %vm85, %v83, 0.0
    %v87 = vmul.f32 %v86, %v86
    %89 = vrot.lane.b32.xlu0 %v87, 32
    %v90 = vpop.permute.xlu0 %89
    %vm92 = vcmask 261120
    %v93 = vsel %vm92, %v86, %v90
    %v94 = vlaneseq
    %v95 = vand.u32 %v94, 127
    %v96 = vld [vmem:[%s54] sm:$0xff]
    %97 = vset.pattern.permute.xlu0 0
    %98 = vperm.xlu0 %97, %v96
    %v99 = vpop.permute.xlu0 %98
    %vm100 = vcmp.eq.s32.totalorder %v95, %v99
    %v101 = vsel %vm100, 1, 0
    %v102 = vcvt.s32.f32 %v101
    %v103 = vld [vmem:[#allocation4] sm:$0x3]
    %104 = vxpose.xlu0.b32.start [1/16] %v102, 128
    %105 = vxpose.xlu0.b32.cont [2/16] 0.0, 128
    %106 = vxpose.xlu0.b32.cont [3/16] 0.0, 128
    %107 = vxpose.xlu0.b32.cont [4/16] 0.0, 128
    %108 = vxpose.xlu0.b32.cont [5/16] 0.0, 128
    %109 = vxpose.xlu0.b32.cont [6/16] 0.0, 128
    %110 = vxpose.xlu0.b32.cont [7/16] 0.0, 128
    %111 = vxpose.xlu0.b32.cont [8/16] 0.0, 128
    %112 = vxpose.xlu0.b32.cont [9/16] 0.0, 128
    %113 = vxpose.xlu0.b32.cont [10/16] 0.0, 128
    %114 = vxpose.xlu0.b32.cont [11/16] 0.0, 128
    %115 = vxpose.xlu0.b32.cont [12/16] 0.0, 128
    %116 = vxpose.xlu0.b32.cont [13/16] 0.0, 128
    %117 = vxpose.xlu0.b32.cont [14/16] 0.0, 128
    %118 = vxpose.xlu0.b32.cont [15/16] 0.0, 128
    %119 = vxpose.xlu0.b32.end [16/16] 0.0, 128
    %v120 = vpop.trf.xlu0
    %v121 = vpop.trf.xlu0
    %v122 = vpop.trf.xlu0
    %v123 = vpop.trf.xlu0
    %v124 = vpop.trf.xlu0
    %v125 = vpop.trf.xlu0
    %v126 = vpop.trf.xlu0
    %v127 = vpop.trf.xlu0
    %v128 = vpop.trf.xlu0
    %v129 = vpop.trf.xlu0
    %v130 = vpop.trf.xlu0
    %v131 = vpop.trf.xlu0
    %v132 = vpop.trf.xlu0
    %v133 = vpop.trf.xlu0
    %v134 = vpop.trf.xlu0
    %v135 = vpop.trf.xlu0
    %vm136 = vcmask 64512
    %v138 = vsel %vm136, %v120, 0
    %140 = vmatprep.subr.mxu0 0.0
    %141 = vmatpush1.msra.mxu0 %v93
    %142 = vmatprep.subr.mxu0 0.0
    %143 = vmatpush1.msra.mxu0 0.0
    %144 = vmatprep.subr.mxu0 0.0
    %145 = vmatpush1.msra.mxu0 0.0
    %146 = vmatprep.subr.mxu0 0.0
    %147 = vmatpush1.msra.mxu0 0.0
    %148 = vmatprep.subr.mxu0 0.0
    %149 = vmatpush1.msra.mxu0 0.0
    %150 = vmatprep.subr.mxu0 0.0
    %151 = vmatpush1.msra.mxu0 0.0
    %152 = vmatprep.subr.mxu0 0.0
    %153 = vmatpush1.msra.mxu0 0.0
    %154 = vmatprep.subr.mxu0 0.0
    %155 = vmatpush1.msra.mxu0 0.0
    %156 = vmatprep.subr.mxu0 0.0
    %157 = vmatpush1.msra.mxu0 0.0
    %158 = vmatprep.subr.mxu0 0.0
    %159 = vmatpush1.msra.mxu0 0.0
    %160 = vmatprep.subr.mxu0 0.0
    %161 = vmatpush1.msra.mxu0 0.0
    %162 = vmatprep.subr.mxu0 0.0
    %163 = vmatpush1.msra.mxu0 0.0
    %164 = vmatprep.subr.mxu0 0.0
    %165 = vmatpush1.msra.mxu0 0.0
    %166 = vmatprep.subr.mxu0 0.0
    %167 = vmatpush1.msra.mxu0 0.0
    %168 = vmatprep.subr.mxu0 0.0
    %169 = vmatpush1.msra.mxu0 0.0
    %170 = vmatprep.subr.mxu0 0.0
    %171 = vmatpush1.msra.mxu0 0.0
    %172 = vmatprep.subr.mxu0 0.0
    %173 = vmatpush1.msra.mxu0 0.0
    %174 = vmatprep.subr.mxu0 0.0
    %175 = vmatpush1.msra.mxu0 0.0
    %176 = vmatprep.subr.mxu0 0.0
    %177 = vmatpush1.msra.mxu0 0.0
    %178 = vmatprep.subr.mxu0 0.0
    %179 = vmatpush1.msra.mxu0 0.0
    %180 = vmatprep.subr.mxu0 0.0
    %181 = vmatpush1.msra.mxu0 0.0
    %182 = vmatprep.subr.mxu0 0.0
    %183 = vmatpush1.msra.mxu0 0.0
    %184 = vmatprep.subr.mxu0 0.0
    %185 = vmatpush1.msra.mxu0 0.0
    %186 = vmatprep.subr.mxu0 0.0
    %187 = vmatpush1.msra.mxu0 0.0
    %188 = vmatprep.subr.mxu0 0.0
    %189 = vmatpush1.msra.mxu0 0.0
    %190 = vmatprep.subr.mxu0 0.0
    %191 = vmatpush1.msra.mxu0 0.0
    %192 = vmatprep.subr.mxu0 0.0
    %193 = vmatpush1.msra.mxu0 0.0
    %194 = vmatprep.subr.mxu0 0.0
    %195 = vmatpush1.msra.mxu0 0.0
    %196 = vmatprep.subr.mxu0 0.0
    %197 = vmatpush1.msra.mxu0 0.0
    %198 = vmatprep.subr.mxu0 0.0
    %199 = vmatpush1.msra.mxu0 0.0
    %200 = vmatprep.subr.mxu0 0.0
    %201 = vmatpush1.msra.mxu0 0.0
    %202 = vmatprep.subr.mxu0 0.0
    %203 = vmatpush1.msra.mxu0 0.0
    %204 = vmatprep.mubr.f32.mxu0 0.0
    %205 = vmatmul.mubr.f32.gmra.mrb[0].mxu0 %v138
    %v206 = vpop.f32.mrb[0].mxu0
    %v207 = vadd.f32 0.0, %v206
    %v208 = vpop.f32.mrb[0].mxu0
    %209 = vdwg.mxu0
    %v210 = vadd.f32 %v103, %v207
    %vm211 = vcmask 517120
    %212 = vst.msk [vmem:[#allocation4] sm:$0x3] %vm211, %v210
    // Predicated region
    $region14: #{tpu_custom_call.1} parent=1 // pred_check
      _
    $region15: #{tpu_custom_call.1} parent=1 // pred_check_branch
      %214 = sbr.rel (0) target = $region17
    $region16: #{tpu_custom_call.1} parent=1 // pred_region
      %s216 = ssub.s32 32, 32
      %217 = vsyncadd [#allocation5], %s216
      %s219 = sshll.u32 [#allocation4], 4
      %s220 = int_to_ptr.vmem [resolvable:$true] %s219
      %222 = dma.vmem_to_hbm [thread:$0]  %s220, 32, %s3, [#allocation5]
    $region17: #{tpu_custom_call.1} parent=1 // pred_fallthru
      _
    // Predicated region
    $region18: #{tpu_custom_call.1} parent=1 // pred_check
      _
    $region19: #{tpu_custom_call.1} parent=1 // pred_check_branch
      %224 = sbr.rel (0) target = $region21
    $region20: #{tpu_custom_call.1} parent=1 // pred_region
      %225 = dma.done [#allocation5], 32
    $region21: #{tpu_custom_call.1} parent=1 // pred_fallthru
      _
    %226 = vsyncpa [#allocation5], 1

</llo_original>
